<compile_context>
chip_gen: v6e
topology: v6e:2x2x1
jax: 0.10.0
libtpu: 0.0.40
codegen_flags: <defaults>
</compile_context>

<pallas_src>
import functools
import math

import jax
import jax.numpy as jnp
from jax.experimental import pallas as pl
from jax.experimental.pallas import tpu as pltpu

_LANE = 128
_SUBLANE = 8
_MXU = 256                               # v6e/v7x MXU tile edge
_VMEM_BUDGET = 44 * 1024 * 1024          # planning budget (headroom under v7x 64 MiB/TC)
_VMEM_LIMIT_CAP = 56 * 1024 * 1024       # never request physical 64 MiB on v7x


def _round_down(x, m):
    return (x // m) * m


def _round_up(x, m):
    return ((x + m - 1) // m) * m


def _resident_vmem(tm, d_in, d_h, d_out, x_b, w_b, out_b):
    """Per-call VMEM footprint when full W1/W2 stay resident (2 pipeline bufs)."""
    return (2 * (d_in * d_h + d_h * d_out) * w_b       # w1 + w2
            + 2 * _SUBLANE * (d_h + d_out) * 4          # biases (sublane padded)
            + 2 * tm * d_in * x_b                       # x row tile
            + 2 * tm * d_out * out_b                    # out row tile
            + tm * d_h * 6                              # hidden f32 + bf16 temporaries
            + tm * (d_in + d_out) * 4)                  # cast / store temporaries


def _streamed_vmem(tm, tk, d_in, d_out, x_b, w_b, out_b):
    """Per-step VMEM footprint when W1/W2 are streamed along the hidden dim."""
    return (2 * (d_in * tk + tk * d_out) * w_b
            + 2 * _SUBLANE * (tk + d_out) * 4
            + 2 * tm * d_in * x_b
            + 2 * tm * d_out * out_b
            + tm * d_out * 4                            # f32 accumulator scratch
            + tm * tk * 6
            + tm * (d_in + d_out) * 4)


def _tk_candidates(d_h):
    """Divisors of d_h that are lane multiples; 256-multiples first (MXU cadence)."""
    m256 = [t for t in range(_round_down(d_h, _MXU), _MXU - 1, -_MXU) if d_h % t == 0]
    m128 = [t for t in range(_round_down(d_h, _LANE), _LANE - 1, -_LANE)
            if d_h % t == 0 and t not in m256]
    return (m256 + m128) or [d_h]


def _pick_tm(M, footprint, target=1024):
    """Row tile: large (above per-gen compute/DMA break-even), VMEM-budget
    enforced, and split so the 'parallel' axis has >= 2 programs (v7x 2 TCs)."""
    if M < 2 * _SUBLANE:
        return M                                       # tiny: one full-dim block
    cap = _round_up(-(-M // 2), _SUBLANE)              # ceil(M/2): >= 2 row tiles
    tm = min(target, cap)
    tm = _round_down(tm, _MXU) if tm >= _MXU else max(_SUBLANE, _round_down(tm, _SUBLANE))
    while tm > _SUBLANE and footprint(tm) > _VMEM_BUDGET:
        nxt = tm // 2
        nxt = _round_down(nxt, _MXU) if nxt >= _MXU else _round_down(nxt, _SUBLANE)
        nxt = max(_SUBLANE, nxt)
        if nxt == tm:
            break
        tm = nxt
    return tm


def _ffn_kernel_resident(x_ref, w1_ref, b1_ref, w2_ref, b2_ref, o_ref, *,
                         compute_dtype):
    """Whole hidden dim in one shot; weights resident in VMEM, no accumulator."""
    h = jnp.dot(x_ref[...].astype(compute_dtype),
                w1_ref[...].astype(compute_dtype),
                preferred_element_type=jnp.float32)
    h = jnp.maximum(h + b1_ref[...].astype(jnp.float32), 0.0)
    out = jnp.dot(h.astype(compute_dtype),
                  w2_ref[...].astype(compute_dtype),
                  preferred_element_type=jnp.float32)
    o_ref[...] = (out + b2_ref[...].astype(jnp.float32)).astype(o_ref.dtype)


def _ffn_kernel_streamed(x_ref, w1_ref, b1_ref, w2_ref, b2_ref, o_ref, acc_ref,
                         *, compute_dtype):
    """Hidden dim streamed in (d_in, tk)/(tk, d_out) slices; f32 accumulator."""
    k = pl.program_id(1)

    @pl.when(k == 0)
    def _init():
        acc_ref[...] = jnp.zeros_like(acc_ref)

    h = jnp.dot(x_ref[...].astype(compute_dtype),
                w1_ref[...].astype(compute_dtype),
                preferred_element_type=jnp.float32)
    h = jnp.maximum(h + b1_ref[...].astype(jnp.float32), 0.0)
    acc_ref[...] += jnp.dot(h.astype(compute_dtype),
                            w2_ref[...].astype(compute_dtype),
                            preferred_element_type=jnp.float32)

    @pl.when(k == pl.num_programs(1) - 1)
    def _finalize():
        o_ref[...] = (acc_ref[...]
                      + b2_ref[...].astype(jnp.float32)).astype(o_ref.dtype)


def positionwise_ffn(x, w1, b1, w2, b2, *, tm=None, tk=None,
                     compute_dtype=jnp.bfloat16, out_dtype=None):
    """x: (batch, seq, d_in) -> (batch, seq, d_out).  y = relu(x@w1+b1)@w2+b2.

    Weights are stored pre-transposed (fan_in, fan_out), matching PyTorch's
    y = x @ W.T + b.  x / weights are read from HBM in their stored dtype and
    cast to `compute_dtype` inside the kernel (no extra wrapper HBM pass);
    matmuls accumulate in f32.  Use compute_dtype=jnp.float32 for parity with
    an f32 PyTorch reference; out_dtype=jnp.bfloat16 halves output writeback.
    """
    batch, seq, d_in = x.shape
    d_h = w1.shape[1]
    d_out = w2.shape[1]
    M = batch * seq
    out_dtype = x.dtype if out_dtype is None else jnp.dtype(out_dtype)

    x2d = x.reshape(M, d_in)
    b1r = b1.reshape(1, d_h)
    b2r = b2.reshape(1, d_out)

    x_b = x2d.dtype.itemsize
    w_b = w1.dtype.itemsize
    out_b = jnp.dtype(out_dtype).itemsize

    # ---- resident-weights vs streamed-hidden-dim decision -------------------
    min_tm = min(M, _MXU)
    want_resident = (tk is None) or (tk == d_h)
    resident = (want_resident and
                _resident_vmem(min_tm, d_in, d_h, d_out, x_b, w_b, out_b)
                <= _VMEM_BUDGET)

    if resident:
        tk = d_h
        footprint = lambda t: _resident_vmem(t, d_in, d_h, d_out, x_b, w_b, out_b)
    else:
        if tk is None:
            tk = None
            cands = _tk_candidates(d_h)
            for cand in cands:
                if _streamed_vmem(min_tm, cand, d_in, d_out,
                                  x_b, w_b, out_b) <= _VMEM_BUDGET:
                    tk = cand
                    break
            if tk is None:
                tk = cands[-1]
        if tk != d_h and (tk % _LANE != 0 or d_h % tk != 0):
            raise ValueError(f"tk={tk} must divide d_h={d_h} and be a multiple "
                             f"of {_LANE} (or equal d_h)")
        footprint = lambda t: _streamed_vmem(t, tk, d_in, d_out, x_b, w_b, out_b)

    if tm is None:
        tm = _pick_tm(M, footprint)
    if tm < M and tm % _SUBLANE != 0:
        tm = max(_SUBLANE, _round_down(tm, _SUBLANE))

    n_m = pl.cdiv(M, tm)
    vmem_limit = int(min(_VMEM_LIMIT_CAP,
                         max(24 * 1024 * 1024, 1.25 * footprint(tm))))

    if resident:
        grid = (n_m,)
        kernel = functools.partial(_ffn_kernel_resident,
                                   compute_dtype=compute_dtype)
        in_specs = [
            pl.BlockSpec((tm, d_in), lambda i: (i, 0)),     # x rows
            pl.BlockSpec((d_in, d_h), lambda i: (0, 0)),    # w1 (resident, 1 DMA)
            pl.BlockSpec((1, d_h), lambda i: (0, 0)),       # b1
            pl.BlockSpec((d_h, d_out), lambda i: (0, 0)),   # w2 (resident, 1 DMA)
            pl.BlockSpec((1, d_out), lambda i: (0, 0)),     # b2
        ]
        out_specs = pl.BlockSpec((tm, d_out), lambda i: (i, 0))
        scratch_shapes = []
        dim_sem = ("parallel",)
    else:
        n_k = d_h // tk
        grid = (n_m, n_k)
        kernel = functools.partial(_ffn_kernel_streamed,
                                   compute_dtype=compute_dtype)
        # Small row tiles can't cover the weight DMA with double buffering
        # (mostly the v5e small-M regime) -> triple-buffer the weight slices.
        if tm < 256:
            w1_spec = pl.BlockSpec((d_in, tk), lambda i, k: (0, k),
                                   pipeline_mode=pl.Buffered(3))
            w2_spec = pl.BlockSpec((tk, d_out), lambda i, k: (k, 0),
                                   pipeline_mode=pl.Buffered(3))
        else:
            w1_spec = pl.BlockSpec((d_in, tk), lambda i, k: (0, k))
            w2_spec = pl.BlockSpec((tk, d_out), lambda i, k: (k, 0))
        in_specs = [
            pl.BlockSpec((tm, d_in), lambda i, k: (i, 0)),   # x rows
            w1_spec,                                          # w1 slice
            pl.BlockSpec((1, tk), lambda i, k: (0, k)),      # b1 slice
            w2_spec,                                          # w2 slice
            pl.BlockSpec((1, d_out), lambda i, k: (0, 0)),   # b2
        ]
        out_specs = pl.BlockSpec((tm, d_out), lambda i, k: (i, 0))
        scratch_shapes = [pltpu.VMEM((tm, d_out), jnp.float32)]
        dim_sem = ("parallel", "arbitrary")

    out2d = pl.pallas_call(
        kernel,
        out_shape=jax.ShapeDtypeStruct((M, d_out), out_dtype),
        grid_spec=pltpu.PrefetchScalarGridSpec(
            num_scalar_prefetch=0,
            grid=grid,
            in_specs=in_specs,
            out_specs=out_specs,
            scratch_shapes=scratch_shapes,
        ),
        compiler_params=pltpu.CompilerParams(
            dimension_semantics=dim_sem,
            vmem_limit_bytes=vmem_limit,
        ),
    )(x2d, w1, b1r, w2, b2r)
    return out2d.reshape(batch, seq, d_out)


def init_params(key, d_in, d_h, d_out, dtype=jnp.float32):
    """Deterministic init mirroring nn.Linear default U(-1/sqrt(fan_in), +)."""
    k1, k2, k3, k4 = jax.random.split(key, 4)
    bound1 = 1.0 / math.sqrt(d_in)
    bound2 = 1.0 / math.sqrt(d_h)
    # Stored pre-transposed: (fan_in, fan_out)
    w1 = jax.random.uniform(k1, (d_in, d_h), dtype, -bound1, bound1)
    b1 = jax.random.uniform(k2, (d_h,), dtype, -bound1, bound1)
    w2 = jax.random.uniform(k3, (d_h, d_out), dtype, -bound2, bound2)
    b2 = jax.random.uniform(k4, (d_out,), dtype, -bound2, bound2)
    return w1, b1, w2, b2


if __name__ == "__main__":
    # NOTE: demo shapes are far below one (8,128) vreg / MXU tile; real configs
    # should use 128-multiple feature dims for lane-dense stores.
    batch, seq = 2, 8
    ffn_num_input, ffn_num_hiddens, ffn_num_outputs = 16, 32, 16

    key = jax.random.PRNGKey(0)
    kx, kp = jax.random.split(key)
    x = jax.random.normal(kx, (batch, seq, ffn_num_input), jnp.float32)
    w1, b1, w2, b2 = init_params(kp, ffn_num_input, ffn_num_hiddens,
                                 ffn_num_outputs)

    out = positionwise_ffn(x, w1, b1, w2, b2)
    jax.block_until_ready(out)

    # Reference mirroring the kernel math (bf16 matmul inputs, f32 accumulate).
    xb = x.reshape(-1, ffn_num_input).astype(jnp.bfloat16)
    h = jnp.maximum(
        jnp.dot(xb, w1.astype(jnp.bfloat16),
                preferred_element_type=jnp.float32) + b1, 0.0)
    ref = jnp.dot(h.astype(jnp.bfloat16), w2.astype(jnp.bfloat16),
                  preferred_element_type=jnp.float32) + b2
    ref = ref.reshape(batch, seq, ffn_num_outputs).astype(x.dtype)

    assert out.shape == (batch, seq, ffn_num_outputs)
    assert jnp.allclose(out, ref, atol=1e-2, rtol=1e-2), \
        float(jnp.max(jnp.abs(out - ref)))

    print("KERNEL_OK")
</pallas_src>

<mosaic_0001>
module attributes {stable_mosaic.version = 11 : i64} {
  func.func @_ffn_kernel_resident(%arg0: i32, %arg1: memref<8x16xf32, #tpu.memory_space<vmem>>, %arg2: memref<16x32xf32, #tpu.memory_space<vmem>>, %arg3: memref<1x32xf32, #tpu.memory_space<vmem>>, %arg4: memref<32x16xf32, #tpu.memory_space<vmem>>, %arg5: memref<1x16xf32, #tpu.memory_space<vmem>>, %arg6: memref<8x16xf32, #tpu.memory_space<vmem>>) attributes {dimension_semantics = [#tpu.dimension_semantics<parallel>], iteration_bounds = array<i64: 2>, scalar_prefetch = 0 : i64, scratch_operands = 0 : i64, tpu.core_type = #tpu.core_type<tc>, window_params = [{transform_indices = @transform_0, window_bounds = array<i64: 8, 16>}, {pipeline_mode = #tpu.pipeline_mode<synchronous>, transform_indices = @transform_1, window_bounds = array<i64: 16, 32>}, {pipeline_mode = #tpu.pipeline_mode<synchronous>, transform_indices = @transform_2, window_bounds = array<i64: 1, 32>}, {pipeline_mode = #tpu.pipeline_mode<synchronous>, transform_indices = @transform_3, window_bounds = array<i64: 32, 16>}, {pipeline_mode = #tpu.pipeline_mode<synchronous>, transform_indices = @transform_4, window_bounds = array<i64: 1, 16>}, {transform_indices = @transform_5, window_bounds = array<i64: 8, 16>}]} {
    %c0 = arith.constant 0 : index
    %c0_0 = arith.constant 0 : index
    %0 = vector.load %arg1[%c0, %c0_0] : memref<8x16xf32, #tpu.memory_space<vmem>>, vector<8x16xf32>
    %1 = arith.truncf %0 : vector<8x16xf32> to vector<8x16xbf16>
    %c0_1 = arith.constant 0 : index
    %c0_2 = arith.constant 0 : index
    %2 = vector.load %arg2[%c0_1, %c0_2] : memref<16x32xf32, #tpu.memory_space<vmem>>, vector<16x32xf32>
    %3 = arith.truncf %2 : vector<16x32xf32> to vector<16x32xbf16>
    %cst = arith.constant dense<0.000000e+00> : vector<8x32xf32>
    %4 = tpu.matmul %1, %3, %cst {dimension_numbers = #tpu.dot_dimension_numbers<[1], [0], [0], [1], [0, 0, 1, 1], [], []>} : vector<8x16xbf16>, vector<16x32xbf16>, vector<8x32xf32> -> vector<8x32xf32>
    %c0_3 = arith.constant 0 : index
    %c0_4 = arith.constant 0 : index
    %5 = vector.load %arg3[%c0_3, %c0_4] : memref<1x32xf32, #tpu.memory_space<vmem>>, vector<1x32xf32>
    %6 = vector.broadcast %5 : vector<1x32xf32> to vector<8x32xf32>
    %7 = arith.addf %4, %6 : vector<8x32xf32>
    %cst_5 = arith.constant 0.000000e+00 : f32
    %8 = vector.broadcast %cst_5 : f32 to vector<8x32xf32>
    %9 = arith.maximumf %7, %8 : vector<8x32xf32>
    %10 = arith.truncf %9 : vector<8x32xf32> to vector<8x32xbf16>
    %c0_6 = arith.constant 0 : index
    %c0_7 = arith.constant 0 : index
    %11 = vector.load %arg4[%c0_6, %c0_7] : memref<32x16xf32, #tpu.memory_space<vmem>>, vector<32x16xf32>
    %12 = arith.truncf %11 : vector<32x16xf32> to vector<32x16xbf16>
    %cst_8 = arith.constant dense<0.000000e+00> : vector<8x16xf32>
    %13 = tpu.matmul %10, %12, %cst_8 {dimension_numbers = #tpu.dot_dimension_numbers<[1], [0], [0], [1], [0, 0, 1, 1], [], []>} : vector<8x32xbf16>, vector<32x16xbf16>, vector<8x16xf32> -> vector<8x16xf32>
    %c0_9 = arith.constant 0 : index
    %c0_10 = arith.constant 0 : index
    %14 = vector.load %arg5[%c0_9, %c0_10] : memref<1x16xf32, #tpu.memory_space<vmem>>, vector<1x16xf32>
    %15 = vector.broadcast %14 : vector<1x16xf32> to vector<8x16xf32>
    %16 = arith.addf %13, %15 : vector<8x16xf32>
    %c0_11 = arith.constant 0 : index
    %c0_12 = arith.constant 0 : index
    %17 = vector.load %arg6[%c0_11, %c0_12] : memref<8x16xf32, #tpu.memory_space<vmem>>, vector<8x16xf32>
    tpu.vector_store %arg6[%c0_11, %c0_12], %16 {strides = array<i32>} : memref<8x16xf32, #tpu.memory_space<vmem>>, vector<8x16xf32>,
    return
  }
  func.func @transform_0(%arg0: i32) -> (i32, i32) {
    %c0_i32 = arith.constant 0 : i32
    %c0_i32_0 = arith.constant 0 : i32
    return %arg0, %c0_i32 : i32, i32
  }
  func.func @transform_1(%arg0: i32) -> (i32, i32) {
    %c0_i32 = arith.constant 0 : i32
    %c0_i32_0 = arith.constant 0 : i32
    %c0_i32_1 = arith.constant 0 : i32
    return %c0_i32, %c0_i32_0 : i32, i32
  }
  func.func @transform_2(%arg0: i32) -> (i32, i32) {
    %c0_i32 = arith.constant 0 : i32
    %c0_i32_0 = arith.constant 0 : i32
    %c0_i32_1 = arith.constant 0 : i32
    return %c0_i32, %c0_i32_0 : i32, i32
  }
  func.func @transform_3(%arg0: i32) -> (i32, i32) {
    %c0_i32 = arith.constant 0 : i32
    %c0_i32_0 = arith.constant 0 : i32
    %c0_i32_1 = arith.constant 0 : i32
    return %c0_i32, %c0_i32_0 : i32, i32
  }
  func.func @transform_4(%arg0: i32) -> (i32, i32) {
    %c0_i32 = arith.constant 0 : i32
    %c0_i32_0 = arith.constant 0 : i32
    %c0_i32_1 = arith.constant 0 : i32
    return %c0_i32, %c0_i32_0 : i32, i32
  }
  func.func @transform_5(%arg0: i32) -> (i32, i32) {
    %c0_i32 = arith.constant 0 : i32
    %c0_i32_0 = arith.constant 0 : i32
    return %arg0, %c0_i32 : i32, i32
  }
}

</mosaic_0001>

<llo_original>
// kernel: tpu_custom_call.1
$region0: #{tpu_custom_call.1}
  #allocation0 [shape = 'u32[]', space=smem, size = 0x4, offset = 0x4, fixed_abs, tag = 'smem constant byte address 0x4 - core index']
  #allocation1 [shape = 'u32[144,128]{1,0:T(1,128)}', space=vmem, size = 0x12000, scoped, tag = 'internal scratch']
  %s0 = inlined_call_operand.vmem [shape: f32[16,16], index: 0, kind: input, shape index: {}]
  %s1 = inlined_call_operand.vmem [shape: f32[16,32], index: 1, kind: input, shape index: {}]
  %s2 = inlined_call_operand.vmem [shape: f32[1,32], index: 2, kind: input, shape index: {}]
  %s3 = inlined_call_operand.vmem [shape: f32[32,16], index: 3, kind: input, shape index: {}]
  %s4 = inlined_call_operand.vmem [shape: f32[1,16], index: 4, kind: input, shape index: {}]
  %s5 = inlined_call_operand.hbm [shape: f32[16,16], index: 5, kind: output, shape index: {}]
  %s6 = sld [smem:[#allocation0]]
  $region53: #{tpu_custom_call.1} parent=0
    _
  %s8 = ssub.s32 1, %s6
  %s9 = scalar_select 0, %s8, %s6
  $region1: #{tpu_custom_call.1} parent=0
    #allocation2 [shape = 'u8[8192]{0}', space=vmem, size = 0x2000, scoped, tag = 'output window, operand 0']
    #allocation3 [shape = 's32[2]{0}', space=sflag, size = 0x8, scoped, tag = 'scoped memory for tpu_custom_call.1']
    %10 = vsyncpa [#allocation3], 0
    %s11 = scalar_lea.sflag [#allocation3], 1
    %12 = vsyncpa %s11, 0
    loop: start=0, step=1, limit=4
    $region2: #{tpu_custom_call.1} parent=1 // loop_pre_header
      _
    $region3: #{tpu_custom_call.1} parent=1 // loop_header
      %s14 = sphi 0, %s18
      %p15 = scmp.ge.s32.totalorder %s14, 4
      %s24 = sphi 0, %s26
      %s27 = sphi 0, %s24
      %s28 = sphi 0, %s27
      %s44 = sphi 0, %s28
      %s48 = sphi 0, %s48
      %s50 = sphi 0, %s48
      %s51 = sphi 0, %s50
      %s65 = sphi 0, %s51
      %s69 = sphi 0, %s69
      %s71 = sphi 0, %s69
      %s72 = sphi 0, %s71
      %s86 = sphi 0, %s72
      %s90 = sphi 0, %s90
      %s92 = sphi 0, %s90
      %s93 = sphi 0, %s92
      %s107 = sphi 0, %s93
      %s111 = sphi 0, %s111
      %s113 = sphi 0, %s111
      %s114 = sphi 0, %s113
      %s128 = sphi 0, %s114
      %s134 = sphi 0, %s136
      %s137 = sphi 0, %s134
      %s138 = sphi 0, %s137
      %s154 = sphi 0, %s138
    $region4: #{tpu_custom_call.1} parent=1 // loop_header_branch
      %17 = sbr.rel (%p15) target = $region8
    $region5: #{tpu_custom_call.1} parent=1 // loop_body
      %s19 = ssub.s32 %s14, 1
      %s20 = ssub.s32 %s14, 2
      %s21 = sadd.s32 %s14, 1
      %s22 = ssub.s32 %s14, %s21
      %p23 = scmp.eq.s32.totalorder %s22, 0
      %s25 = sadd.s32 %s24, 1
      %s26 = scalar_select %p23, %s24, %s25
      %p29 = pneg %p23
      %p30 = scmp.eq.s32.totalorder %s14, 1
      %p31 = por %p29, %p30
      %p32 = scmp.ne.s32.totalorder %s24, %s27
      %p33 = scmp.eq.s32.totalorder %s14, 0
      %p34 = por %p32, %p33
      %p35 = scmp.ne.s32.totalorder %s24, %s27
      %p36 = scmp.eq.s32.totalorder %s19, 1
      %p37 = por %p35, %p36
      %p38 = scmp.ne.s32.totalorder %s27, %s28
      %p39 = scmp.eq.s32.totalorder %s19, 0
      %p40 = por %p38, %p39
      %p41 = scmp.ne.s32.totalorder %s27, %s28
      %p42 = scmp.eq.s32.totalorder %s20, 1
      %p43 = por %p41, %p42
      %p45 = scmp.ne.s32.totalorder %s28, %s44
      %p46 = scmp.eq.s32.totalorder %s20, 0
      %p47 = por %p45, %p46
      %s49 = sadd.s32 %s48, 1
      %p52 = scmp.eq.s32.totalorder %s14, 1
      %p53 = scmp.ne.s32.totalorder %s48, %s50
      %p54 = scmp.eq.s32.totalorder %s14, 0
      %p55 = por %p53, %p54
      %p56 = scmp.ne.s32.totalorder %s48, %s50
      %p57 = scmp.eq.s32.totalorder %s19, 1
      %p58 = por %p56, %p57
      %p59 = scmp.ne.s32.totalorder %s50, %s51
      %p60 = scmp.eq.s32.totalorder %s19, 0
      %p61 = por %p59, %p60
      %p62 = scmp.ne.s32.totalorder %s50, %s51
      %p63 = scmp.eq.s32.totalorder %s20, 1
      %p64 = por %p62, %p63
      %p66 = scmp.ne.s32.totalorder %s51, %s65
      %p67 = scmp.eq.s32.totalorder %s20, 0
      %p68 = por %p66, %p67
      %s70 = sadd.s32 %s69, 1
      %p73 = scmp.eq.s32.totalorder %s14, 1
      %p74 = scmp.ne.s32.totalorder %s69, %s71
      %p75 = scmp.eq.s32.totalorder %s14, 0
      %p76 = por %p74, %p75
      %p77 = scmp.ne.s32.totalorder %s69, %s71
      %p78 = scmp.eq.s32.totalorder %s19, 1
      %p79 = por %p77, %p78
      %p80 = scmp.ne.s32.totalorder %s71, %s72
      %p81 = scmp.eq.s32.totalorder %s19, 0
      %p82 = por %p80, %p81
      %p83 = scmp.ne.s32.totalorder %s71, %s72
      %p84 = scmp.eq.s32.totalorder %s20, 1
      %p85 = por %p83, %p84
      %p87 = scmp.ne.s32.totalorder %s72, %s86
      %p88 = scmp.eq.s32.totalorder %s20, 0
      %p89 = por %p87, %p88
      %s91 = sadd.s32 %s90, 1
      %p94 = scmp.eq.s32.totalorder %s14, 1
      %p95 = scmp.ne.s32.totalorder %s90, %s92
      %p96 = scmp.eq.s32.totalorder %s14, 0
      %p97 = por %p95, %p96
      %p98 = scmp.ne.s32.totalorder %s90, %s92
      %p99 = scmp.eq.s32.totalorder %s19, 1
      %p100 = por %p98, %p99
      %p101 = scmp.ne.s32.totalorder %s92, %s93
      %p102 = scmp.eq.s32.totalorder %s19, 0
      %p103 = por %p101, %p102
      %p104 = scmp.ne.s32.totalorder %s92, %s93
      %p105 = scmp.eq.s32.totalorder %s20, 1
      %p106 = por %p104, %p105
      %p108 = scmp.ne.s32.totalorder %s93, %s107
      %p109 = scmp.eq.s32.totalorder %s20, 0
      %p110 = por %p108, %p109
      %s112 = sadd.s32 %s111, 1
      %p115 = scmp.eq.s32.totalorder %s14, 1
      %p116 = scmp.ne.s32.totalorder %s111, %s113
      %p117 = scmp.eq.s32.totalorder %s14, 0
      %p118 = por %p116, %p117
      %p119 = scmp.ne.s32.totalorder %s111, %s113
      %p120 = scmp.eq.s32.totalorder %s19, 1
      %p121 = por %p119, %p120
      %p122 = scmp.ne.s32.totalorder %s113, %s114
      %p123 = scmp.eq.s32.totalorder %s19, 0
      %p124 = por %p122, %p123
      %p125 = scmp.ne.s32.totalorder %s113, %s114
      %p126 = scmp.eq.s32.totalorder %s20, 1
      %p127 = por %p125, %p126
      %p129 = scmp.ne.s32.totalorder %s114, %s128
      %p130 = scmp.eq.s32.totalorder %s20, 0
      %p131 = por %p129, %p130
      %s132 = ssub.s32 %s14, %s21
      %p133 = scmp.eq.s32.totalorder %s132, 0
      %s135 = sadd.s32 %s134, 1
      %s136 = scalar_select %p133, %s134, %s135
      %p139 = pneg %p133
      %p140 = scmp.eq.s32.totalorder %s14, 1
      %p141 = por %p139, %p140
      %p142 = scmp.ne.s32.totalorder %s134, %s137
      %p143 = scmp.eq.s32.totalorder %s14, 0
      %p144 = por %p142, %p143
      %p145 = scmp.ne.s32.totalorder %s134, %s137
      %p146 = scmp.eq.s32.totalorder %s19, 1
      %p147 = por %p145, %p146
      %p148 = scmp.ne.s32.totalorder %s137, %s138
      %p149 = scmp.eq.s32.totalorder %s19, 0
      %p150 = por %p148, %p149
      %p151 = scmp.ne.s32.totalorder %s137, %s138
      %p152 = scmp.eq.s32.totalorder %s20, 1
      %p153 = por %p151, %p152
      %p155 = scmp.ne.s32.totalorder %s138, %s154
      %p156 = scmp.eq.s32.totalorder %s20, 0
      %p157 = por %p155, %p156
      %p158 = scmp.le.s32.totalorder 1, %s14
      %p159 = scmp.lt.s32.totalorder %s14, 3
      %p160 = pnand %p158, %p159
      %p161 = pneg %p160
      // Predicated region
      $region9: #{tpu_custom_call.1} parent=5 // pred_check
        _
      $region10: #{tpu_custom_call.1} parent=5 // pred_check_branch
        %163 = sbr.rel (%p160) target = $region12
      $region11: #{tpu_custom_call.1} parent=5 // pred_region
        %s164 = ssub.s32 %s14, 1
        // Predicated region
        $region13: #{tpu_custom_call.1} parent=11 // pred_check
          %p165 = pneg %p61
        $region14: #{tpu_custom_call.1} parent=11 // pred_check_branch
          %167 = sbr.rel (%p165) target = $region16
        $region15: #{tpu_custom_call.1} parent=11 // pred_region
          _
        $region16: #{tpu_custom_call.1} parent=11 // pred_fallthru
          _
        // Predicated region
        $region17: #{tpu_custom_call.1} parent=11 // pred_check
          %p168 = pneg %p82
        $region18: #{tpu_custom_call.1} parent=11 // pred_check_branch
          %170 = sbr.rel (%p168) target = $region20
        $region19: #{tpu_custom_call.1} parent=11 // pred_region
          _
        $region20: #{tpu_custom_call.1} parent=11 // pred_fallthru
          _
        // Predicated region
        $region21: #{tpu_custom_call.1} parent=11 // pred_check
          %p171 = pneg %p103
        $region22: #{tpu_custom_call.1} parent=11 // pred_check_branch
          %173 = sbr.rel (%p171) target = $region24
        $region23: #{tpu_custom_call.1} parent=11 // pred_region
          _
        $region24: #{tpu_custom_call.1} parent=11 // pred_fallthru
          _
        // Predicated region
        $region25: #{tpu_custom_call.1} parent=11 // pred_check
          %p174 = pneg %p124
        $region26: #{tpu_custom_call.1} parent=11 // pred_check_branch
          %176 = sbr.rel (%p174) target = $region28
        $region27: #{tpu_custom_call.1} parent=11 // pred_region
          _
        $region28: #{tpu_custom_call.1} parent=11 // pred_fallthru
          _
      $region12: #{tpu_custom_call.1} parent=5 // pred_fallthru
        _
      %p177 = scmp.lt.s32.totalorder %s14, 2
      // Predicated region
      $region29: #{tpu_custom_call.1} parent=5 // pred_check
        %p178 = pneg %p177
      $region30: #{tpu_custom_call.1} parent=5 // pred_check_branch
        %180 = sbr.rel (%p178) target = $region32
      $region31: #{tpu_custom_call.1} parent=5 // pred_region
        // Predicated region
        $region33: #{tpu_custom_call.1} parent=31 // pred_check
          %p181 = pneg %p34
        $region34: #{tpu_custom_call.1} parent=31 // pred_check_branch
          %183 = sbr.rel (%p181) target = $region36
        $region35: #{tpu_custom_call.1} parent=31 // pred_region
          %p184 = scmp.lt.s32.totalorder %s14, 1
          %s185 = scalar_select %p184, %s14, 1
          %s186 = smul.addr %s185, 8
          %s187 = scalar_lea.vmem %s0, %s186
        $region36: #{tpu_custom_call.1} parent=31 // pred_fallthru
          _
      $region32: #{tpu_custom_call.1} parent=5 // pred_fallthru
        _
      %p188 = scmp.le.s32.totalorder 1, %s14
      %p189 = scmp.lt.s32.totalorder %s14, 3
      %p190 = pnand %p188, %p189
      %p191 = pneg %p190
      // Predicated region
      $region37: #{tpu_custom_call.1} parent=5 // pred_check
        _
      $region38: #{tpu_custom_call.1} parent=5 // pred_check_branch
        %193 = sbr.rel (%p190) target = $region40
      $region39: #{tpu_custom_call.1} parent=5 // pred_region
        %s194 = ssub.s32 %s14, 1
        %p195 = scmp.lt.s32.totalorder %s19, 1
        %s196 = scalar_select %p195, %s19, 1
        %s197 = smul.addr %s196, 8
        %s198 = scalar_lea.vmem %s0, %s197
        %p199 = pneg %p40
        %p200 = pneg %p37
        %p201 = pneg %p61
        %p202 = pneg %p58
        %p203 = pneg %p82
        %p204 = pneg %p79
        %p205 = pneg %p103
        %p206 = pneg %p100
        %p207 = pneg %p124
        %p208 = pneg %p121
        %p209 = pneg %p150
        %p210 = pneg %p147
        %s211 = sand.u32 %s137, 1
        %s212 = scalar_lea.sflag [#allocation3], %s211
        %s213 = sand.u32 %s137, 1
        %s214 = smul.addr %s213, 8
        %s215 = scalar_lea.vmem [#allocation2], %s214
        %p216 = scmp.lt.s32.totalorder %s19, 1
        %s217 = scalar_select %p216, %s19, 1
        %s218 = smul.addr %s217, 8
        %s219 = scalar_lea.vmem %s0, %s218
        %v221 = vld [vmem:[%s219] sm:$0xff]
        %v222 = vpack.c.bf16 %v221, %v221
        %v223 = vld [vmem:[%s1] sm:$0xff]
        %v224 = vld [vmem:[%s1 + $0x8] sm:$0xff]
        %v225 = vpack.c.bf16 %v224, %v223
        %v226 = vld [vmem:[%s2] sm:$0x1]
        %v228 = vlaneseq
        %v229 = vshrl.u32 %v228, 7
        %v230 = vsub.s32 0, %v229
        %v231 = vrot.slane %v226, %v230
        %vm233 = vcmask 130048
        %v235 = vsel %vm233, %v222, 0
        %237 = vmatprep.subr.bf16.mxu0 0
        %238 = vmatpush1.bf16.msra.mxu0 0
        %239 = vmatprep.subr.bf16.mxu0 0
        %240 = vmatpush1.bf16.msra.mxu0 0
        %241 = vmatprep.subr.bf16.mxu0 0
        %242 = vmatpush1.bf16.msra.mxu0 0
        %243 = vmatprep.subr.bf16.mxu0 0
        %244 = vmatpush1.bf16.msra.mxu0 0
        %245 = vmatprep.subr.bf16.mxu0 0
        %246 = vmatpush1.bf16.msra.mxu0 0
        %247 = vmatprep.subr.bf16.mxu0 0
        %248 = vmatpush1.bf16.msra.mxu0 0
        %249 = vmatprep.subr.bf16.mxu0 0
        %250 = vmatpush1.bf16.msra.mxu0 0
        %251 = vmatprep.subr.bf16.mxu0 0
        %252 = vmatpush1.bf16.msra.mxu0 %v225
        %253 = vmatprep.subr.bf16.mxu0 0
        %254 = vmatpush2.bf16.msra.mxu0 0
        %255 = vmatprep.subr.bf16.mxu0 0
        %256 = vmatpush2.bf16.msra.mxu0 0
        %257 = vmatprep.subr.bf16.mxu0 0
        %258 = vmatpush2.bf16.msra.mxu0 0
        %259 = vmatprep.subr.bf16.mxu0 0
        %260 = vmatpush2.bf16.msra.mxu0 0
        %261 = vmatprep.subr.bf16.mxu0 0
        %262 = vmatpush2.bf16.msra.mxu0 0
        %263 = vmatprep.subr.bf16.mxu0 0
        %264 = vmatpush2.bf16.msra.mxu0 0
        %265 = vmatprep.subr.bf16.mxu0 0
        %266 = vmatpush2.bf16.msra.mxu0 0
        %267 = vmatprep.subr.bf16.mxu0 0
        %268 = vmatpush2.bf16.msra.mxu0 0
        %269 = vmatprep.mubr.bf16.mxu0 0
        %270 = vmatmul.mubr.bf16.gmra.mxu0 %v235
        %v271 = vpop.f32.mrf.mxu0
        %v272 = vadd.f32 %v231, %v271
        %v273 = vpop.f32.mrf.mxu0
        %v274 = vpop.f32.mrf.mxu0
        %v275 = vpop.f32.mrf.mxu0
        %276 = vdwg.mxu0
        %v277 = vmax.f32 %v272, 0.0
        %v278 = vpack.c.bf16 %v277, %v277
        %v279 = vld [vmem:[%s3] sm:$0xff]
        %v280 = vld [vmem:[%s3 + $0x8] sm:$0xff]
        %v281 = vld [vmem:[%s3 + $0x10] sm:$0xff]
        %v282 = vld [vmem:[%s3 + $0x18] sm:$0xff]
        %v283 = vpack.c.bf16 %v280, %v279
        %v284 = vpack.c.bf16 %v282, %v281
        %v285 = vld [vmem:[%s4] sm:$0x1]
        %v287 = vlaneseq
        %v288 = vshrl.u32 %v287, 7
        %v289 = vsub.s32 0, %v288
        %v290 = vrot.slane %v285, %v289
        %vm292 = vcmask 261120
        %v294 = vsel %vm292, %v278, 0
        %296 = vmatprep.subr.bf16.mxu0 0
        %297 = vmatpush1.bf16.msra.mxu0 0
        %298 = vmatprep.subr.bf16.mxu0 0
        %299 = vmatpush1.bf16.msra.mxu0 0
        %300 = vmatprep.subr.bf16.mxu0 0
        %301 = vmatpush1.bf16.msra.mxu0 0
        %302 = vmatprep.subr.bf16.mxu0 0
        %303 = vmatpush1.bf16.msra.mxu0 0
        %304 = vmatprep.subr.bf16.mxu0 0
        %305 = vmatpush1.bf16.msra.mxu0 0
        %306 = vmatprep.subr.bf16.mxu0 0
        %307 = vmatpush1.bf16.msra.mxu0 0
        %308 = vmatprep.subr.bf16.mxu0 0
        %309 = vmatpush1.bf16.msra.mxu0 %v284
        %310 = vmatprep.subr.bf16.mxu0 0
        %311 = vmatpush1.bf16.msra.mxu0 %v283
        %312 = vmatprep.subr.bf16.mxu0 0
        %313 = vmatpush2.bf16.msra.mxu0 0
        %314 = vmatprep.subr.bf16.mxu0 0
        %315 = vmatpush2.bf16.msra.mxu0 0
        %316 = vmatprep.subr.bf16.mxu0 0
        %317 = vmatpush2.bf16.msra.mxu0 0
        %318 = vmatprep.subr.bf16.mxu0 0
        %319 = vmatpush2.bf16.msra.mxu0 0
        %320 = vmatprep.subr.bf16.mxu0 0
        %321 = vmatpush2.bf16.msra.mxu0 0
        %322 = vmatprep.subr.bf16.mxu0 0
        %323 = vmatpush2.bf16.msra.mxu0 0
        %324 = vmatprep.subr.bf16.mxu0 0
        %325 = vmatpush2.bf16.msra.mxu0 0
        %326 = vmatprep.subr.bf16.mxu0 0
        %327 = vmatpush2.bf16.msra.mxu0 0
        %328 = vmatprep.mubr.bf16.mxu0 0
        %329 = vmatmul.mubr.bf16.gmra.mxu0 %v294
        %v330 = vpop.f32.mrf.mxu0
        %v331 = vadd.f32 %v290, %v330
        %v332 = vpop.f32.mrf.mxu0
        %v333 = vpop.f32.mrf.mxu0
        %v334 = vpop.f32.mrf.mxu0
        %335 = vdwg.mxu0
        %336 = vst.msk [vmem:[%s215] sm:$0xff] %vm233, %v331
        %s337 = sand.u32 %s137, 1
        %s338 = scalar_lea.sflag [#allocation3], %s337
        %s339 = sand.u32 %s137, 1
        %s340 = smul.addr %s339, 8
        %s341 = scalar_lea.vmem [#allocation2], %s340
        // Predicated region
        $region41: #{tpu_custom_call.1} parent=39 // pred_check
          %p342 = pneg %p147
        $region42: #{tpu_custom_call.1} parent=39 // pred_check_branch
          %344 = sbr.rel (%p342) target = $region44
        $region43: #{tpu_custom_call.1} parent=39 // pred_region
          %s346 = ssub.s32 128, 128
          %347 = vsyncadd %s338, %s346
          %s348 = smul.addr %s19, 128
          %s349 = scalar_lea.hbm %s5, %s348
          %s351 = sshll.u32 %s341, 4
          %s352 = int_to_ptr.vmem [resolvable:$true] %s351
          %354 = dma.vmem_to_hbm [thread:$0]  %s352, 128, %s349, %s338
        $region44: #{tpu_custom_call.1} parent=39 // pred_fallthru
          _
      $region40: #{tpu_custom_call.1} parent=5 // pred_fallthru
        _
      %p355 = scmp.le.s32.totalorder 2, %s14
      // Predicated region
      $region45: #{tpu_custom_call.1} parent=5 // pred_check
        %p356 = pneg %p355
      $region46: #{tpu_custom_call.1} parent=5 // pred_check_branch
        %358 = sbr.rel (%p356) target = $region48
      $region47: #{tpu_custom_call.1} parent=5 // pred_region
        %s359 = ssub.s32 %s14, 2
        // Predicated region
        $region49: #{tpu_custom_call.1} parent=47 // pred_check
          %p360 = pneg %p153
        $region50: #{tpu_custom_call.1} parent=47 // pred_check_branch
          %362 = sbr.rel (%p360) target = $region52
        $region51: #{tpu_custom_call.1} parent=47 // pred_region
          %s363 = sand.u32 %s138, 1
          %s364 = scalar_lea.sflag [#allocation3], %s363
          %s365 = sand.u32 %s138, 1
          %s366 = smul.addr %s365, 8
          %s367 = scalar_lea.vmem [#allocation2], %s366
          %368 = dma.done %s364, 128
        $region52: #{tpu_custom_call.1} parent=47 // pred_fallthru
          _
      $region48: #{tpu_custom_call.1} parent=5 // pred_fallthru
        _
    $region6: #{tpu_custom_call.1} parent=1 // loop_footer
      %s18 = sadd.s32 1, %s14
    $region7: #{tpu_custom_call.1} parent=1 // loop_footer_branch
      %13 = sbr.rel target = $region3
    $region8: #{tpu_custom_call.1} parent=1 // loop_exit
      _
    %369 = vsyncpa [#allocation3], 1
    %s370 = scalar_lea.sflag [#allocation3], 1
    %371 = vsyncpa %s370, 1

</llo_original>
